<compile_context>
chip_gen: v7x
topology: tpu7x:2x2x1
jax: 0.10.0
libtpu: 0.0.40
codegen_flags: <defaults>
</compile_context>

<pallas_src>
import functools

import jax
import jax.numpy as jnp
from jax.experimental import pallas as pl
from jax.experimental.pallas import tpu as pltpu


def _ubce_kernel(x_ref, t_ref, sum_ref, cnt_ref, loss_acc, cnt_acc, *,
                 old_cl, ignore_index, hw, t_pix):
    i = pl.program_id(1)

    # Reset the per-image lane-dense accumulators on the first pixel block.
    @pl.when(i == 0)
    def _init():
        loss_acc[...] = jnp.zeros_like(loss_acc)
        cnt_acc[...] = jnp.zeros_like(cnt_acc)

    x = x_ref[0].astype(jnp.float32)                   # (C, T)  classes x pixels
    t = t_ref[0]                                       # (1, T)  int32 labels
    c, tp = x.shape

    ch = jax.lax.broadcasted_iota(jnp.int32, (c, tp), 0)     # class id per sublane
    lane = jax.lax.broadcasted_iota(jnp.int32, (1, tp), 1)   # pixel id in block

    # Single-exp logsumexp: one max, one exp pass, two sublane sums.
    m_all = jnp.max(x, axis=0, keepdims=True)                # (1, T)
    e = jnp.exp(x - m_all)                                   # (C, T)
    log_sum_all = jnp.log(jnp.sum(e, axis=0, keepdims=True))                    # (1,T)
    log_sum_old = jnp.log(jnp.sum(jnp.where(ch < old_cl, e, 0.0),
                                  axis=0, keepdims=True))                       # (1,T)

    # Remap old-class labels to the merged background channel 0 and gather
    # the label logit directly (no full `out` tensor).
    labels = jnp.where(t < old_cl, 0, t)                                         # (1,T)
    x_at_label = jnp.sum(jnp.where(ch == labels, x, 0.0), axis=0, keepdims=True)  # (1,T)

    #   label == 0 : log p(any old class) = (m+log_sum_old) - (m+log_sum_all)
    #   label >= old_cl : x_label - den   = x_label - m - log_sum_all
    picked = jnp.where(labels == 0, log_sum_old, x_at_label - m_all) - log_sum_all

    # Valid = not ignored AND inside the true pixel range (masks the tail block).
    in_bounds = (i * t_pix + lane) < hw
    valid = (t != ignore_index) & in_bounds

    loss_acc[...] += jnp.where(valid, -picked, 0.0)
    cnt_acc[...] += jnp.where(valid, 1.0, 0.0)

    # Collapse to the two per-image scalars only once, on the last pixel block.
    @pl.when(i == pl.num_programs(1) - 1)
    def _fin():
        sum_ref[...] = jnp.sum(loss_acc[...], axis=1, keepdims=True).reshape(1, 1, 1)
        cnt_ref[...] = jnp.sum(cnt_acc[...], axis=1, keepdims=True).reshape(1, 1, 1)


def unbiased_cross_entropy(inputs, targets, *, old_cl, ignore_index=255,
                           reduction="mean", block_pixels=8192):
    """inputs: (N, C, H, W) float logits (f32 or bf16); targets: (N, H, W) int labels."""
    n, c, h, w = inputs.shape
    hw = h * w

    # Free reshapes only — no transpose, no pad, no dtype upcast in HBM.
    logits = inputs.reshape(n, c, hw)
    tgt = targets.reshape(n, 1, hw).astype(jnp.int32)

    bp = max(128, (block_pixels // 128) * 128)     # lane-aligned tile
    t_pix = hw if hw <= bp else bp                 # full-dim block if image is small
    n_blk = pl.cdiv(hw, t_pix)

    kernel = functools.partial(_ubce_kernel, old_cl=old_cl,
                               ignore_index=ignore_index, hw=hw, t_pix=t_pix)

    s, cnt = pl.pallas_call(
        kernel,
        out_shape=(jax.ShapeDtypeStruct((n, 1, 1), jnp.float32),
                   jax.ShapeDtypeStruct((n, 1, 1), jnp.float32)),
        grid_spec=pltpu.PrefetchScalarGridSpec(
            num_scalar_prefetch=0,
            grid=(n, n_blk),
            in_specs=[
                pl.BlockSpec((1, c, t_pix), lambda b, i: (b, 0, i)),
                pl.BlockSpec((1, 1, t_pix), lambda b, i: (b, 0, i)),
            ],
            out_specs=(
                pl.BlockSpec((1, 1, 1), lambda b, i: (b, 0, 0)),
                pl.BlockSpec((1, 1, 1), lambda b, i: (b, 0, 0)),
            ),
            scratch_shapes=[pltpu.VMEM((1, t_pix), jnp.float32),
                            pltpu.VMEM((1, t_pix), jnp.float32)],
        ),
        compiler_params=pltpu.CompilerParams(
            dimension_semantics=("parallel", "arbitrary"),
            vmem_limit_bytes=32 * 1024 * 1024),
    )(logits, tgt)

    total = jnp.sum(s)
    count = jnp.sum(cnt)
    if reduction == "mean":
        return total / count
    elif reduction == "sum":
        return total
    else:
        # TODO(synk): reduction='none' needs a per-pixel output map (not scalars).
        raise NotImplementedError("only 'mean' and 'sum' reductions are implemented")


def _reference(inputs, targets, old_cl, ignore_index=255):
    """Pure-JAX reference matching the PyTorch forward (reduction='mean')."""
    den = jax.nn.logsumexp(inputs, axis=1)
    outputs = jnp.zeros_like(inputs)
    outputs = outputs.at[:, 0].set(jax.nn.logsumexp(inputs[:, :old_cl], axis=1) - den)
    outputs = outputs.at[:, old_cl:].set(inputs[:, old_cl:] - den[:, None])
    labels = jnp.where(targets < old_cl, 0, targets).astype(jnp.int32)
    picked = jnp.take_along_axis(outputs, labels[:, None], axis=1)[:, 0]
    valid = targets != ignore_index
    return jnp.sum(jnp.where(valid, -picked, 0.0)) / jnp.sum(valid)


if __name__ == "__main__":
    N, C, H, W = 2, 6, 16, 16
    OLD_CL = 4
    IGNORE = 255

    key = jax.random.PRNGKey(0)
    k1, k2, k3 = jax.random.split(key, 3)
    x = jax.random.normal(k1, (N, C, H, W), dtype=jnp.float32)
    t = jax.random.randint(k2, (N, H, W), 0, C)
    ignore_mask = jax.random.uniform(k3, (N, H, W)) < 0.1
    t = jnp.where(ignore_mask, IGNORE, t).astype(jnp.int32)

    loss = unbiased_cross_entropy(x, t, old_cl=OLD_CL, ignore_index=IGNORE)
    loss = jax.block_until_ready(loss)

    ref = _reference(x, t, OLD_CL, IGNORE)
    assert abs(float(loss) - float(ref)) < 1e-4, (float(loss), float(ref))
    print("KERNEL_OK")
</pallas_src>

<mosaic_0001>
module attributes {stable_mosaic.version = 11 : i64} {
  func.func @_ubce_kernel(%arg0: i32, %arg1: i32, %arg2: memref<1x6x256xf32, #tpu.memory_space<vmem>>, %arg3: memref<1x1x256xi32, #tpu.memory_space<vmem>>, %arg4: memref<1x1x1xf32, #tpu.memory_space<vmem>>, %arg5: memref<1x1x1xf32, #tpu.memory_space<vmem>>, %arg6: memref<1x256xf32, #tpu.memory_space<vmem>>, %arg7: memref<1x256xf32, #tpu.memory_space<vmem>>) attributes {dimension_semantics = [#tpu.dimension_semantics<parallel>, #tpu.dimension_semantics<arbitrary>], iteration_bounds = array<i64: 2, 1>, scalar_prefetch = 0 : i64, scratch_operands = 2 : i64, tpu.core_type = #tpu.core_type<tc>, window_params = [{transform_indices = @transform_0, window_bounds = array<i64: 1, 6, 256>}, {transform_indices = @transform_1, window_bounds = array<i64: 1, 1, 256>}, {transform_indices = @transform_2, window_bounds = array<i64: 1, 1, 1>}, {transform_indices = @transform_3, window_bounds = array<i64: 1, 1, 1>}]} {
    %c0_i32 = arith.constant 0 : i32
    %0 = arith.cmpi eq, %arg1, %c0_i32 : i32
    %1 = arith.extui %0 : i1 to i32
    %c0_i32_0 = arith.constant 0 : i32
    %2 = arith.cmpi ne, %1, %c0_i32_0 : i32
    scf.if %2 {
      %cst_29 = arith.constant 0.000000e+00 : f32
      %63 = vector.broadcast %cst_29 : f32 to vector<1x256xf32>
      %c0_30 = arith.constant 0 : index
      %c0_31 = arith.constant 0 : index
      %64 = vector.load %arg6[%c0_30, %c0_31] : memref<1x256xf32, #tpu.memory_space<vmem>>, vector<1x256xf32>
      tpu.vector_store %arg6[%c0_30, %c0_31], %63 {strides = array<i32>} : memref<1x256xf32, #tpu.memory_space<vmem>>, vector<1x256xf32>,
      %cst_32 = arith.constant 0.000000e+00 : f32
      %65 = vector.broadcast %cst_32 : f32 to vector<1x256xf32>
      %c0_33 = arith.constant 0 : index
      %c0_34 = arith.constant 0 : index
      %66 = vector.load %arg7[%c0_33, %c0_34] : memref<1x256xf32, #tpu.memory_space<vmem>>, vector<1x256xf32>
      tpu.vector_store %arg7[%c0_33, %c0_34], %65 {strides = array<i32>} : memref<1x256xf32, #tpu.memory_space<vmem>>, vector<1x256xf32>,
    } else {
    }
    %c0 = arith.constant 0 : index
    %c0_1 = arith.constant 0 : index
    %c0_2 = arith.constant 0 : index
    %3 = vector.load %arg2[%c0, %c0_1, %c0_2] : memref<1x6x256xf32, #tpu.memory_space<vmem>>, vector<1x6x256xf32>
    %4 = vector.shape_cast %3 : vector<1x6x256xf32> to vector<6x256xf32>
    %c0_3 = arith.constant 0 : index
    %c0_4 = arith.constant 0 : index
    %c0_5 = arith.constant 0 : index
    %5 = vector.load %arg3[%c0_3, %c0_4, %c0_5] : memref<1x1x256xi32, #tpu.memory_space<vmem>>, vector<1x1x256xi32>
    %6 = vector.shape_cast %5 : vector<1x1x256xi32> to vector<1x256xi32>
    %7 = tpu.iota {dimensions = array<i32: 0>} : vector<6x256xi32>
    %8 = tpu.iota {dimensions = array<i32: 1>} : vector<1x256xi32>
    %cst = arith.constant dense<0xFF800000> : vector<256xf32>
    %9 = vector.multi_reduction <maximumf>, %4, %cst [0] : vector<6x256xf32> to vector<256xf32>
    %10 = vector.shape_cast %9 : vector<256xf32> to vector<1x256xf32>
    %11 = vector.broadcast %10 : vector<1x256xf32> to vector<6x256xf32>
    %12 = arith.subf %4, %11 : vector<6x256xf32>
    %13 = math.exp %12 : vector<6x256xf32>
    %cst_6 = arith.constant dense<0.000000e+00> : vector<256xf32>
    %14 = vector.multi_reduction <add>, %13, %cst_6 [0] : vector<6x256xf32> to vector<256xf32>
    %15 = vector.shape_cast %14 : vector<256xf32> to vector<1x256xf32>
    %16 = math.log %15 : vector<1x256xf32>
    %c4_i32 = arith.constant 4 : i32
    %17 = vector.broadcast %c4_i32 : i32 to vector<6x256xi32>
    %18 = arith.cmpi slt, %7, %17 : vector<6x256xi32>
    %cst_7 = arith.constant 0.000000e+00 : f32
    %19 = vector.broadcast %cst_7 : f32 to vector<6x256xf32>
    %20 = arith.select %18, %13, %19 : vector<6x256xi1>, vector<6x256xf32>
    %cst_8 = arith.constant dense<0.000000e+00> : vector<256xf32>
    %21 = vector.multi_reduction <add>, %20, %cst_8 [0] : vector<6x256xf32> to vector<256xf32>
    %22 = vector.shape_cast %21 : vector<256xf32> to vector<1x256xf32>
    %23 = math.log %22 : vector<1x256xf32>
    %c4_i32_9 = arith.constant 4 : i32
    %24 = vector.broadcast %c4_i32_9 : i32 to vector<1x256xi32>
    %25 = arith.cmpi slt, %6, %24 : vector<1x256xi32>
    %c0_i32_10 = arith.constant 0 : i32
    %26 = vector.broadcast %c0_i32_10 : i32 to vector<1x256xi32>
    %27 = arith.select %25, %26, %6 : vector<1x256xi1>, vector<1x256xi32>
    %28 = vector.broadcast %27 : vector<1x256xi32> to vector<6x256xi32>
    %29 = arith.cmpi eq, %7, %28 : vector<6x256xi32>
    %cst_11 = arith.constant 0.000000e+00 : f32
    %30 = vector.broadcast %cst_11 : f32 to vector<6x256xf32>
    %31 = arith.select %29, %4, %30 : vector<6x256xi1>, vector<6x256xf32>
    %cst_12 = arith.constant dense<0.000000e+00> : vector<256xf32>
    %32 = vector.multi_reduction <add>, %31, %cst_12 [0] : vector<6x256xf32> to vector<256xf32>
    %33 = vector.shape_cast %32 : vector<256xf32> to vector<1x256xf32>
    %c0_i32_13 = arith.constant 0 : i32
    %34 = vector.broadcast %c0_i32_13 : i32 to vector<1x256xi32>
    %35 = arith.cmpi eq, %27, %34 : vector<1x256xi32>
    %36 = arith.subf %33, %10 : vector<1x256xf32>
    %37 = arith.select %35, %23, %36 : vector<1x256xi1>, vector<1x256xf32>
    %38 = arith.subf %37, %16 : vector<1x256xf32>
    %c256_i32 = arith.constant 256 : i32
    %39 = arith.muli %arg1, %c256_i32 : i32
    %40 = vector.broadcast %39 : i32 to vector<1x256xi32>
    %41 = arith.addi %40, %8 : vector<1x256xi32>
    %c256_i32_14 = arith.constant 256 : i32
    %42 = vector.broadcast %c256_i32_14 : i32 to vector<1x256xi32>
    %43 = arith.cmpi slt, %41, %42 : vector<1x256xi32>
    %c255_i32 = arith.constant 255 : i32
    %44 = vector.broadcast %c255_i32 : i32 to vector<1x256xi32>
    %45 = arith.cmpi ne, %6, %44 : vector<1x256xi32>
    %46 = arith.andi %45, %43 : vector<1x256xi1>
    %c0_15 = arith.constant 0 : index
    %c0_16 = arith.constant 0 : index
    %47 = vector.load %arg6[%c0_15, %c0_16] : memref<1x256xf32, #tpu.memory_space<vmem>>, vector<1x256xf32>
    %cst_17 = arith.constant 0.000000e+00 : f32
    %48 = vector.broadcast %cst_17 : f32 to vector<1x256xf32>
    %49 = arith.subf %48, %38 : vector<1x256xf32>
    %cst_18 = arith.constant 0.000000e+00 : f32
    %50 = vector.broadcast %cst_18 : f32 to vector<1x256xf32>
    %51 = arith.select %46, %49, %50 : vector<1x256xi1>, vector<1x256xf32>
    %52 = arith.addf %47, %51 : vector<1x256xf32>
    %c0_19 = arith.constant 0 : index
    %c0_20 = arith.constant 0 : index
    %53 = vector.load %arg6[%c0_19, %c0_20] : memref<1x256xf32, #tpu.memory_space<vmem>>, vector<1x256xf32>
    tpu.vector_store %arg6[%c0_19, %c0_20], %52 {strides = array<i32>} : memref<1x256xf32, #tpu.memory_space<vmem>>, vector<1x256xf32>,
    %c0_21 = arith.constant 0 : index
    %c0_22 = arith.constant 0 : index
    %54 = vector.load %arg7[%c0_21, %c0_22] : memref<1x256xf32, #tpu.memory_space<vmem>>, vector<1x256xf32>
    %cst_23 = arith.constant 1.000000e+00 : f32
    %cst_24 = arith.constant 0.000000e+00 : f32
    %55 = vector.broadcast %cst_23 : f32 to vector<1x256xf32>
    %56 = vector.broadcast %cst_24 : f32 to vector<1x256xf32>
    %57 = arith.select %46, %55, %56 : vector<1x256xi1>, vector<1x256xf32>
    %58 = arith.addf %54, %57 : vector<1x256xf32>
    %c0_25 = arith.constant 0 : index
    %c0_26 = arith.constant 0 : index
    %59 = vector.load %arg7[%c0_25, %c0_26] : memref<1x256xf32, #tpu.memory_space<vmem>>, vector<1x256xf32>
    tpu.vector_store %arg7[%c0_25, %c0_26], %58 {strides = array<i32>} : memref<1x256xf32, #tpu.memory_space<vmem>>, vector<1x256xf32>,
    %c0_i32_27 = arith.constant 0 : i32
    %60 = arith.cmpi eq, %arg1, %c0_i32_27 : i32
    %61 = arith.extui %60 : i1 to i32
    %c0_i32_28 = arith.constant 0 : i32
    %62 = arith.cmpi ne, %61, %c0_i32_28 : i32
    scf.if %62 {
      %c0_29 = arith.constant 0 : index
      %c0_30 = arith.constant 0 : index
      %63 = vector.load %arg6[%c0_29, %c0_30] : memref<1x256xf32, #tpu.memory_space<vmem>>, vector<1x256xf32>
      %cst_31 = arith.constant dense<0.000000e+00> : vector<1xf32>
      %64 = vector.multi_reduction <add>, %63, %cst_31 [1] : vector<1x256xf32> to vector<1xf32>
      %65 = vector.shape_cast %64 : vector<1xf32> to vector<1x1xf32>
      %66 = vector.shape_cast %65 : vector<1x1xf32> to vector<1x1x1xf32>
      %c0_32 = arith.constant 0 : index
      %c0_33 = arith.constant 0 : index
      %c0_34 = arith.constant 0 : index
      %67 = vector.load %arg4[%c0_32, %c0_33, %c0_34] : memref<1x1x1xf32, #tpu.memory_space<vmem>>, vector<1x1x1xf32>
      tpu.vector_store %arg4[%c0_32, %c0_33, %c0_34], %66 {strides = array<i32>} : memref<1x1x1xf32, #tpu.memory_space<vmem>>, vector<1x1x1xf32>,
      %c0_35 = arith.constant 0 : index
      %c0_36 = arith.constant 0 : index
      %68 = vector.load %arg7[%c0_35, %c0_36] : memref<1x256xf32, #tpu.memory_space<vmem>>, vector<1x256xf32>
      %cst_37 = arith.constant dense<0.000000e+00> : vector<1xf32>
      %69 = vector.multi_reduction <add>, %68, %cst_37 [1] : vector<1x256xf32> to vector<1xf32>
      %70 = vector.shape_cast %69 : vector<1xf32> to vector<1x1xf32>
      %71 = vector.shape_cast %70 : vector<1x1xf32> to vector<1x1x1xf32>
      %c0_38 = arith.constant 0 : index
      %c0_39 = arith.constant 0 : index
      %c0_40 = arith.constant 0 : index
      %72 = vector.load %arg5[%c0_38, %c0_39, %c0_40] : memref<1x1x1xf32, #tpu.memory_space<vmem>>, vector<1x1x1xf32>
      tpu.vector_store %arg5[%c0_38, %c0_39, %c0_40], %71 {strides = array<i32>} : memref<1x1x1xf32, #tpu.memory_space<vmem>>, vector<1x1x1xf32>,
    } else {
    }
    return
  }
  func.func @transform_0(%arg0: i32, %arg1: i32) -> (i32, i32, i32) {
    %c0_i32 = arith.constant 0 : i32
    %c0_i32_0 = arith.constant 0 : i32
    return %arg0, %c0_i32, %arg1 : i32, i32, i32
  }
  func.func @transform_1(%arg0: i32, %arg1: i32) -> (i32, i32, i32) {
    %c0_i32 = arith.constant 0 : i32
    %c0_i32_0 = arith.constant 0 : i32
    return %arg0, %c0_i32, %arg1 : i32, i32, i32
  }
  func.func @transform_2(%arg0: i32, %arg1: i32) -> (i32, i32, i32) {
    %c0_i32 = arith.constant 0 : i32
    %c0_i32_0 = arith.constant 0 : i32
    %c0_i32_1 = arith.constant 0 : i32
    return %arg0, %c0_i32, %c0_i32_0 : i32, i32, i32
  }
  func.func @transform_3(%arg0: i32, %arg1: i32) -> (i32, i32, i32) {
    %c0_i32 = arith.constant 0 : i32
    %c0_i32_0 = arith.constant 0 : i32
    %c0_i32_1 = arith.constant 0 : i32
    return %arg0, %c0_i32, %c0_i32_0 : i32, i32, i32
  }
}

</mosaic_0001>

<llo_original>
// kernel: tpu_custom_call.1
$region0: #{tpu_custom_call.1}
  #allocation0 [shape = 'u32[]', space=smem, size = 0x4, offset = 0x4, fixed_abs, tag = 'smem constant byte address 0x4 - core index']
  #allocation1 [shape = 'u32[144,128]{1,0:T(1,128)}', space=vmem, size = 0x12000, scoped, tag = 'internal scratch']
  #allocation2 [shape = 'f32[1,256]{1,0:T(1,128)}', space=vmem, size = 0x400, scoped, tag = 'scratch operand']
  #allocation3 [shape = 'f32[1,256]{1,0:T(1,128)}', space=vmem, size = 0x400, scoped, tag = 'scratch operand']
  %s0 = inlined_call_operand.vmem [shape: f32[2,6,256], index: 0, kind: input, shape index: {}]
  %s1 = inlined_call_operand.vmem [shape: s32[2,1,256], index: 1, kind: input, shape index: {}]
  %s2 = inlined_call_operand.vmem [shape: f32[2,1,1], index: 2, kind: output, shape index: {0}]
  %s3 = inlined_call_operand.vmem [shape: f32[2,1,1], index: 3, kind: output, shape index: {1}]
  %4 = xla_tuple %s2, %s3
  %s5 = sld [smem:[#allocation0]]
  $region57: #{tpu_custom_call.1} parent=0
    _
  %s7 = ssub.s32 1, %s5
  %s8 = scalar_select 0, %s7, %s5
  loop: start=0, step=1, limit=4
  $region2: #{tpu_custom_call.1} parent=0 // loop_pre_header
    _
  $region3: #{tpu_custom_call.1} parent=0 // loop_header
    %s10 = sphi 0, %s14
    %p11 = scmp.ge.s32.totalorder %s10, 4
    %s17 = sphi 0, %s29
    %s18 = sphi 0, %s25
    %s19 = sphi 0, %s17
    %s20 = sphi 0, %s18
    %s21 = sphi 0, %s19
    %s22 = sphi 0, %s20
    %s34 = sphi 0, %s36
    %s37 = sphi 0, %s34
    %s38 = sphi 0, %s37
    %s54 = sphi 0, %s38
    %s62 = sphi 0, %s64
    %s65 = sphi 0, %s62
    %s66 = sphi 0, %s65
    %s82 = sphi 0, %s66
    %s88 = sphi 0, %s90
    %s91 = sphi 0, %s88
    %s92 = sphi 0, %s91
    %s108 = sphi 0, %s92
    %s114 = sphi 0, %s116
    %s117 = sphi 0, %s114
    %s118 = sphi 0, %s117
    %s134 = sphi 0, %s118
  $region4: #{tpu_custom_call.1} parent=0 // loop_header_branch
    %13 = sbr.rel (%p11) target = $region8
  $region5: #{tpu_custom_call.1} parent=0 // loop_body
    %s15 = ssub.s32 %s10, 1
    %s16 = ssub.s32 %s10, 2
    %s23 = sadd.s32 1, %s18
    %p24 = scmp.ge.s32.totalorder %s23, 1
    %s25 = scalar_select %p24, 0, %s23
    %s26 = sadd.s32 1, %s17
    %s27 = scalar_select %p24, %s26, %s17
    %p28 = scmp.ge.s32.totalorder %s27, 2
    %s29 = scalar_select %p28, 0, %s27
    %s30 = ssub.s32 %s17, %s29
    %s31 = ssub.s32 %s18, %s25
    %s32 = sor.u32 %s30, %s31
    %p33 = scmp.eq.s32.totalorder %s32, 0
    %s35 = sadd.s32 %s34, 1
    %s36 = scalar_select %p33, %s34, %s35
    %p39 = pneg %p33
    %p40 = scmp.eq.s32.totalorder %s10, 1
    %p41 = por %p39, %p40
    %p42 = scmp.ne.s32.totalorder %s34, %s37
    %p43 = scmp.eq.s32.totalorder %s10, 0
    %p44 = por %p42, %p43
    %p45 = scmp.ne.s32.totalorder %s34, %s37
    %p46 = scmp.eq.s32.totalorder %s15, 1
    %p47 = por %p45, %p46
    %p48 = scmp.ne.s32.totalorder %s37, %s38
    %p49 = scmp.eq.s32.totalorder %s15, 0
    %p50 = por %p48, %p49
    %p51 = scmp.ne.s32.totalorder %s37, %s38
    %p52 = scmp.eq.s32.totalorder %s16, 1
    %p53 = por %p51, %p52
    %p55 = scmp.ne.s32.totalorder %s38, %s54
    %p56 = scmp.eq.s32.totalorder %s16, 0
    %p57 = por %p55, %p56
    %s58 = ssub.s32 %s17, %s29
    %s59 = ssub.s32 %s18, %s25
    %s60 = sor.u32 %s58, %s59
    %p61 = scmp.eq.s32.totalorder %s60, 0
    %s63 = sadd.s32 %s62, 1
    %s64 = scalar_select %p61, %s62, %s63
    %p67 = pneg %p61
    %p68 = scmp.eq.s32.totalorder %s10, 1
    %p69 = por %p67, %p68
    %p70 = scmp.ne.s32.totalorder %s62, %s65
    %p71 = scmp.eq.s32.totalorder %s10, 0
    %p72 = por %p70, %p71
    %p73 = scmp.ne.s32.totalorder %s62, %s65
    %p74 = scmp.eq.s32.totalorder %s15, 1
    %p75 = por %p73, %p74
    %p76 = scmp.ne.s32.totalorder %s65, %s66
    %p77 = scmp.eq.s32.totalorder %s15, 0
    %p78 = por %p76, %p77
    %p79 = scmp.ne.s32.totalorder %s65, %s66
    %p80 = scmp.eq.s32.totalorder %s16, 1
    %p81 = por %p79, %p80
    %p83 = scmp.ne.s32.totalorder %s66, %s82
    %p84 = scmp.eq.s32.totalorder %s16, 0
    %p85 = por %p83, %p84
    %s86 = ssub.s32 %s17, %s29
    %p87 = scmp.eq.s32.totalorder %s86, 0
    %s89 = sadd.s32 %s88, 1
    %s90 = scalar_select %p87, %s88, %s89
    %p93 = pneg %p87
    %p94 = scmp.eq.s32.totalorder %s10, 1
    %p95 = por %p93, %p94
    %p96 = scmp.ne.s32.totalorder %s88, %s91
    %p97 = scmp.eq.s32.totalorder %s10, 0
    %p98 = por %p96, %p97
    %p99 = scmp.ne.s32.totalorder %s88, %s91
    %p100 = scmp.eq.s32.totalorder %s15, 1
    %p101 = por %p99, %p100
    %p102 = scmp.ne.s32.totalorder %s91, %s92
    %p103 = scmp.eq.s32.totalorder %s15, 0
    %p104 = por %p102, %p103
    %p105 = scmp.ne.s32.totalorder %s91, %s92
    %p106 = scmp.eq.s32.totalorder %s16, 1
    %p107 = por %p105, %p106
    %p109 = scmp.ne.s32.totalorder %s92, %s108
    %p110 = scmp.eq.s32.totalorder %s16, 0
    %p111 = por %p109, %p110
    %s112 = ssub.s32 %s17, %s29
    %p113 = scmp.eq.s32.totalorder %s112, 0
    %s115 = sadd.s32 %s114, 1
    %s116 = scalar_select %p113, %s114, %s115
    %p119 = pneg %p113
    %p120 = scmp.eq.s32.totalorder %s10, 1
    %p121 = por %p119, %p120
    %p122 = scmp.ne.s32.totalorder %s114, %s117
    %p123 = scmp.eq.s32.totalorder %s10, 0
    %p124 = por %p122, %p123
    %p125 = scmp.ne.s32.totalorder %s114, %s117
    %p126 = scmp.eq.s32.totalorder %s15, 1
    %p127 = por %p125, %p126
    %p128 = scmp.ne.s32.totalorder %s117, %s118
    %p129 = scmp.eq.s32.totalorder %s15, 0
    %p130 = por %p128, %p129
    %p131 = scmp.ne.s32.totalorder %s117, %s118
    %p132 = scmp.eq.s32.totalorder %s16, 1
    %p133 = por %p131, %p132
    %p135 = scmp.ne.s32.totalorder %s118, %s134
    %p136 = scmp.eq.s32.totalorder %s16, 0
    %p137 = por %p135, %p136
    %p138 = scmp.le.s32.totalorder 1, %s10
    %p139 = scmp.lt.s32.totalorder %s10, 3
    %p140 = pnand %p138, %p139
    %p141 = pneg %p140
    // Predicated region
    $region9: #{tpu_custom_call.1} parent=5 // pred_check
      _
    $region10: #{tpu_custom_call.1} parent=5 // pred_check_branch
      %143 = sbr.rel (%p140) target = $region12
    $region11: #{tpu_custom_call.1} parent=5 // pred_region
      %s144 = ssub.s32 %s10, 1
    $region12: #{tpu_custom_call.1} parent=5 // pred_fallthru
      _
    %p145 = scmp.lt.s32.totalorder %s10, 2
    // Predicated region
    $region13: #{tpu_custom_call.1} parent=5 // pred_check
      %p146 = pneg %p145
    $region14: #{tpu_custom_call.1} parent=5 // pred_check_branch
      %148 = sbr.rel (%p146) target = $region16
    $region15: #{tpu_custom_call.1} parent=5 // pred_region
      // Predicated region
      $region17: #{tpu_custom_call.1} parent=15 // pred_check
        %p149 = pneg %p44
      $region18: #{tpu_custom_call.1} parent=15 // pred_check_branch
        %151 = sbr.rel (%p149) target = $region20
      $region19: #{tpu_custom_call.1} parent=15 // pred_region
        %s152 = smul.u32 2, %s18
        %p153 = scmp.lt.s32.totalorder %s17, 1
        %s154 = scalar_select %p153, %s17, 1
        %p155 = scmp.lt.s32.totalorder %s152, 1
        %s156 = scalar_select %p155, %s152, 1
        %s157 = smul.addr %s154, 2
        %s158 = sadd.s32 %s156, %s157
        %s159 = smul.addr %s158, 8
        %s160 = scalar_lea.vmem %s0, %s159
        %s161 = smul.u32 2, %s18
      $region20: #{tpu_custom_call.1} parent=15 // pred_fallthru
        _
      // Predicated region
      $region21: #{tpu_custom_call.1} parent=15 // pred_check
        %p162 = pneg %p72
      $region22: #{tpu_custom_call.1} parent=15 // pred_check_branch
        %164 = sbr.rel (%p162) target = $region24
      $region23: #{tpu_custom_call.1} parent=15 // pred_region
        %s165 = smul.u32 2, %s18
        %p166 = scmp.lt.s32.totalorder %s17, 1
        %s167 = scalar_select %p166, %s17, 1
        %p168 = scmp.lt.s32.totalorder %s165, 1
        %s169 = scalar_select %p168, %s165, 1
        %s170 = smul.addr %s167, 2
        %s171 = sadd.s32 %s169, %s170
        %s172 = scalar_lea.vmem %s1, %s171
        %s173 = smul.u32 2, %s18
      $region24: #{tpu_custom_call.1} parent=15 // pred_fallthru
        _
    $region16: #{tpu_custom_call.1} parent=5 // pred_fallthru
      _
    %p174 = scmp.le.s32.totalorder 1, %s10
    %p175 = scmp.lt.s32.totalorder %s10, 3
    %p176 = pnand %p174, %p175
    %p177 = pneg %p176
    // Predicated region
    $region25: #{tpu_custom_call.1} parent=5 // pred_check
      _
    $region26: #{tpu_custom_call.1} parent=5 // pred_check_branch
      %179 = sbr.rel (%p176) target = $region28
    $region27: #{tpu_custom_call.1} parent=5 // pred_region
      %s180 = ssub.s32 %s10, 1
      %s181 = smul.u32 2, %s20
      %p182 = scmp.lt.s32.totalorder %s19, 1
      %s183 = scalar_select %p182, %s19, 1
      %p184 = scmp.lt.s32.totalorder %s181, 1
      %s185 = scalar_select %p184, %s181, 1
      %s186 = smul.addr %s183, 2
      %s187 = sadd.s32 %s185, %s186
      %s188 = smul.addr %s187, 8
      %s189 = scalar_lea.vmem %s0, %s188
      %p190 = pneg %p50
      %p191 = pneg %p47
      %s192 = smul.u32 2, %s20
      %p193 = scmp.lt.s32.totalorder %s19, 1
      %s194 = scalar_select %p193, %s19, 1
      %p195 = scmp.lt.s32.totalorder %s192, 1
      %s196 = scalar_select %p195, %s192, 1
      %s197 = smul.addr %s194, 2
      %s198 = sadd.s32 %s196, %s197
      %s199 = scalar_lea.vmem %s1, %s198
      %p200 = pneg %p78
      %p201 = pneg %p75
      %p202 = pneg %p104
      %p203 = pneg %p101
      %p204 = scmp.lt.s32.totalorder %s19, 1
      %s205 = scalar_select %p204, %s19, 1
      %s206 = scalar_lea.vmem %s2, %s205
      %p207 = pneg %p130
      %p208 = pneg %p127
      %p209 = scmp.lt.s32.totalorder %s19, 1
      %s210 = scalar_select %p209, %s19, 1
      %s211 = scalar_lea.vmem %s3, %s210
      %s212 = smul.u32 2, %s20
      %p213 = scmp.lt.s32.totalorder %s19, 1
      %s214 = scalar_select %p213, %s19, 1
      %p215 = scmp.lt.s32.totalorder %s212, 1
      %s216 = scalar_select %p215, %s212, 1
      %s217 = smul.addr %s214, 2
      %s218 = sadd.s32 %s216, %s217
      %s219 = smul.addr %s218, 8
      %s220 = scalar_lea.vmem %s0, %s219
      %s221 = smul.u32 2, %s20
      %s222 = smul.u32 2, %s20
      %p223 = scmp.lt.s32.totalorder %s19, 1
      %s224 = scalar_select %p223, %s19, 1
      %p225 = scmp.lt.s32.totalorder %s222, 1
      %s226 = scalar_select %p225, %s222, 1
      %s227 = smul.addr %s224, 2
      %s228 = sadd.s32 %s226, %s227
      %s229 = scalar_lea.vmem %s1, %s228
      %s230 = smul.u32 2, %s20
      %p231 = scmp.lt.s32.totalorder %s19, 1
      %s232 = scalar_select %p231, %s19, 1
      %s233 = scalar_lea.vmem %s2, %s232
      %p234 = scmp.lt.s32.totalorder %s19, 1
      %s235 = scalar_select %p234, %s19, 1
      %s236 = scalar_lea.vmem %s3, %s235
      %p237 = scmp.eq.s32.totalorder %s20, 0
      // Predicated region
      $region29: #{tpu_custom_call.1} parent=27 // pred_check
        %p238 = pneg %p237
      $region30: #{tpu_custom_call.1} parent=27 // pred_check_branch
        %240 = sbr.rel (%p238) target = $region32
      $region31: #{tpu_custom_call.1} parent=27 // pred_region
        %v241 = vlaneseq
        %vm242 = vcmp.ge.s32.totalorder %v241, 0
        %vm243 = vcmp.lt.s32.totalorder %v241, 256
        %vm244 = vmand %vm242, %vm243
        %245 = vst.msk [vmem:[#allocation2] sm:$0x3] %vm244, 0.0
        %246 = vst.msk [vmem:[#allocation3] sm:$0x3] %vm244, 0.0
      $region32: #{tpu_custom_call.1} parent=27 // pred_fallthru
        _
      %v247 = vld [vmem:[%s220] sm:$0x3f]
      %v248 = vld [vmem:[%s220 + $0x8] sm:$0x3f]
      %v249 = vld [vmem:[%s229] sm:$0x3]
      %v250 = vlaneseq
      %v251 = vshrl.u32 %v250, 7
      %v252 = vlaneseq
      %v253 = vand.u32 %v252, 127
      %v254 = vadd.s32 %v253, 128
      %vm255 = vcmask 1045504
      %v256 = vsel %vm255, %v247, -inf
      %v257 = vrot.slane %v256, 4
      %v258 = vmax.f32 %v256, %v257
      %v259 = vrot.slane %v258, 2
      %v260 = vmax.f32 %v258, %v259
      %v261 = vrot.slane %v260, 1
      %v262 = vmax.f32 %v260, %v261
      %v263 = vsel %vm255, %v248, -inf
      %v264 = vrot.slane %v263, 4
      %v265 = vmax.f32 %v263, %v264
      %v266 = vrot.slane %v265, 2
      %v267 = vmax.f32 %v265, %v266
      %v268 = vrot.slane %v267, 1
      %v269 = vmax.f32 %v267, %v268
      %v270 = vsub.f32 %v247, %v262
      %v271 = vsub.f32 %v248, %v269
      %v272 = vmul.f32 %v270, 1.442695
      %v273 = vpow.pop %v272
      %v274 = vmul.f32 %v271, 1.442695
      %v275 = vpow.pop %v274
      %v276 = vsel %vm255, %v273, 0.0
      %v277 = vrot.slane %v276, 4
      %v278 = vadd.f32 %v276, %v277
      %v279 = vrot.slane %v278, 2
      %v280 = vadd.f32 %v278, %v279
      %v281 = vrot.slane %v280, 1
      %v282 = vadd.f32 %v280, %v281
      %v283 = vsel %vm255, %v275, 0.0
      %v284 = vrot.slane %v283, 4
      %v285 = vadd.f32 %v283, %v284
      %v286 = vrot.slane %v285, 2
      %v287 = vadd.f32 %v285, %v286
      %v288 = vrot.slane %v287, 1
      %v289 = vadd.f32 %v287, %v288
      %v290 = vlog2.pop %v282
      %v291 = vmul.f32 %v290, 0.6931472
      %v292 = vlog2.pop %v289
      %v293 = vmul.f32 %v292, 0.6931472
      %vm294 = vcmp.lt.s32.totalorder %v251, 4
      %v295 = vsel %vm294, %v273, 0.0
      %v296 = vsel %vm294, %v275, 0.0
      %v297 = vsel %vm255, %v295, 0.0
      %v298 = vrot.slane %v297, 4
      %v299 = vadd.f32 %v297, %v298
      %v300 = vrot.slane %v299, 2
      %v301 = vadd.f32 %v299, %v300
      %v302 = vrot.slane %v301, 1
      %v303 = vadd.f32 %v301, %v302
      %v304 = vsel %vm255, %v296, 0.0
      %v305 = vrot.slane %v304, 4
      %v306 = vadd.f32 %v304, %v305
      %v307 = vrot.slane %v306, 2
      %v308 = vadd.f32 %v306, %v307
      %v309 = vrot.slane %v308, 1
      %v310 = vadd.f32 %v308, %v309
      %v311 = vlog2.pop %v303
      %v312 = vmul.f32 %v311, 0.6931472
      %v313 = vlog2.pop %v310
      %v314 = vmul.f32 %v313, 0.6931472
      %vm315 = vcmp.lt.s32.totalorder %v249, 4
      %v316 = vsel %vm315, 0, %v249
      %v317 = vlaneseq
      %v318 = vshrl.u32 %v317, 7
      %v319 = vsub.s32 0, %v318
      %v320 = vrot.slane %v316, %v319
      %v321 = vlaneseq
      %v322 = vshrl.u32 %v321, 7
      %v323 = vsub.s32 1, %v322
      %v324 = vrot.slane %v316, %v323
      %vm325 = vcmp.eq.s32.totalorder %v251, %v320
      %vm326 = vcmp.eq.s32.totalorder %v251, %v324
      %v327 = vsel %vm325, %v247, 0.0
      %v328 = vsel %vm326, %v248, 0.0
      %v329 = vsel %vm255, %v327, 0.0
      %v330 = vrot.slane %v329, 4
      %v331 = vadd.f32 %v329, %v330
      %v332 = vrot.slane %v331, 2
      %v333 = vadd.f32 %v331, %v332
      %v334 = vrot.slane %v333, 1
      %v335 = vadd.f32 %v333, %v334
      %v336 = vsel %vm255, %v328, 0.0
      %v337 = vrot.slane %v336, 4
      %v338 = vadd.f32 %v336, %v337
      %v339 = vrot.slane %v338, 2
      %v340 = vadd.f32 %v338, %v339
      %v341 = vrot.slane %v340, 1
      %v342 = vadd.f32 %v340, %v341
      %vm343 = vcmp.eq.s32.totalorder %v316, 0
      %v344 = vsub.f32 %v335, %v262
      %v345 = vsub.f32 %v342, %v269
      %v348 = vcombine.low %v312, %v314
      %v350 = vunpack.c.l.s4 1966171168
      %v351 = vunpack.c.0.s8 %v350
      %v352 = vlaneseq
      %v353 = vshrl.u32 %v352, 7
      %v354 = vsub.s32 %v351, %v353
      %v355 = vrot.slane %v348, %v354
      %v357 = vunpack.c.l.s4 1966171168
      %v358 = vunpack.c.0.s8 %v357
      %v359 = vlaneseq
      %v360 = vshrl.u32 %v359, 7
      %v361 = vsub.s32 %v358, %v360
      %v362 = vrot.slane %v355, %v361
      %v366 = vcombine.low %v344, %v345
      %v368 = vunpack.c.l.s4 1966171168
      %v369 = vunpack.c.0.s8 %v368
      %v370 = vlaneseq
      %v371 = vshrl.u32 %v370, 7
      %v372 = vsub.s32 %v369, %v371
      %v373 = vrot.slane %v366, %v372
      %v375 = vunpack.c.l.s4 1966171168
      %v376 = vunpack.c.0.s8 %v375
      %v377 = vlaneseq
      %v378 = vshrl.u32 %v377, 7
      %v379 = vsub.s32 %v376, %v378
      %v380 = vrot.slane %v373, %v379
      %v382 = vsel %vm343, %v362, %v380
      %v385 = vcombine.low %v291, %v293
      %v387 = vunpack.c.l.s4 1966171168
      %v388 = vunpack.c.0.s8 %v387
      %v389 = vlaneseq
      %v390 = vshrl.u32 %v389, 7
      %v391 = vsub.s32 %v388, %v390
      %v392 = vrot.slane %v385, %v391
      %v394 = vunpack.c.l.s4 1966171168
      %v395 = vunpack.c.0.s8 %v394
      %v396 = vlaneseq
      %v397 = vshrl.u32 %v396, 7
      %v398 = vsub.s32 %v395, %v397
      %v399 = vrot.slane %v392, %v398
      %v401 = vsub.f32 %v382, %v399
      %s402 = smul.u32 %s20, 256
      %v403 = vstv %s402
      %v404 = vadd.s32 %v403, %v253
      %v405 = vadd.s32 %v403, %v254
      %vm406 = vcmp.lt.s32.totalorder %v404, 256
      %vm407 = vcmp.lt.s32.totalorder %v405, 256
      %vm408 = vcmp.ne.s32.totalorder %v249, 255
      %v409 = vsel %vm406, 1, 0
      %v410 = vsel %vm407, 1, 0
      %v411 = vcombine.low %v409, %v410
      %v413 = vunpack.c.l.s4 1966171168
      %v414 = vunpack.c.0.s8 %v413
      %v415 = vlaneseq
      %v416 = vshrl.u32 %v415, 7
      %v417 = vsub.s32 %v414, %v416
      %v418 = vrot.slane %v411, %v417
      %v420 = vunpack.c.l.s4 1966171168
      %v421 = vunpack.c.0.s8 %v420
      %v422 = vlaneseq
      %v423 = vshrl.u32 %v422, 7
      %v424 = vsub.s32 %v421, %v423
      %v425 = vrot.slane %v418, %v424
      %vm426 = vcmp.ne.s32.totalorder %v425, 0
      %vm427 = vmand %vm408, %vm426
      %v428 = vld [vmem:[#allocation2] sm:$0x3]
      %v429 = vsub.f32 0.0, %v401
      %v430 = vsel %vm427, %v429, 0.0
      %v431 = vadd.f32 %v428, %v430
      %v432 = vlaneseq
      %vm433 = vcmp.ge.s32.totalorder %v432, 0
      %vm434 = vcmp.lt.s32.totalorder %v432, 256
      %vm435 = vmand %vm433, %vm434
      %436 = vst.msk [vmem:[#allocation2] sm:$0x3] %vm435, %v431
      %v437 = vld [vmem:[#allocation3] sm:$0x3]
      %v438 = vsel %vm427, 1.0, 0.0
      %v439 = vadd.f32 %v437, %v438
      %440 = vst.msk [vmem:[#allocation3] sm:$0x3] %vm435, %v439
      // Predicated region
      $region33: #{tpu_custom_call.1} parent=27 // pred_check
        %p441 = pneg %p237
      $region34: #{tpu_custom_call.1} parent=27 // pred_check_branch
        %443 = sbr.rel (%p441) target = $region36
      $region35: #{tpu_custom_call.1} parent=27 // pred_region
        %v444 = vld [vmem:[#allocation2] sm:$0x3]
        %v446 = vlaneseq
        %v447 = vshrl.u32 %v446, 7
        %v448 = vsub.s32 0, %v447
        %v449 = vrot.slane %v444, %v448
        %v450 = vlaneseq
        %v451 = vshrl.u32 %v450, 7
        %v452 = vsub.s32 1, %v451
        %v453 = vrot.slane %v444, %v452
        %vm456 = vcmask 1040384
        %v457 = vsel %vm456, %v449, 0.0
        %v458 = vsel %vm456, %v453, 0.0
        %v459 = vadd.f32 %v457, %v458
        %460 = vadd.xlane.f32.xlu0 %v459
        %v461 = vpop.xlane.xlu0 %460
        %vm462 = vcmask 0
        %463 = vst.msk [vmem:[%s233] sm:$0x1] %vm462, %v461
        %v464 = vld [vmem:[#allocation3] sm:$0x3]
        %v466 = vlaneseq
        %v467 = vshrl.u32 %v466, 7
        %v468 = vsub.s32 0, %v467
        %v469 = vrot.slane %v464, %v468
        %v470 = vlaneseq
        %v471 = vshrl.u32 %v470, 7
        %v472 = vsub.s32 1, %v471
        %v473 = vrot.slane %v464, %v472
        %v476 = vsel %vm456, %v469, 0.0
        %v477 = vsel %vm456, %v473, 0.0
        %v478 = vadd.f32 %v476, %v477
        %479 = vadd.xlane.f32.xlu0 %v478
        %v480 = vpop.xlane.xlu0 %479
        %481 = vst.msk [vmem:[%s236] sm:$0x1] %vm462, %v480
      $region36: #{tpu_custom_call.1} parent=27 // pred_fallthru
        _
      %p482 = scmp.lt.s32.totalorder %s19, 1
      %s483 = scalar_select %p482, %s19, 1
      %s484 = scalar_lea.vmem %s2, %s483
      %p485 = scmp.lt.s32.totalorder %s19, 1
      %s486 = scalar_select %p485, %s19, 1
      %s487 = scalar_lea.vmem %s3, %s486
      // Predicated region
      $region37: #{tpu_custom_call.1} parent=27 // pred_check
        %p488 = pneg %p101
      $region38: #{tpu_custom_call.1} parent=27 // pred_check_branch
        %490 = sbr.rel (%p488) target = $region40
      $region39: #{tpu_custom_call.1} parent=27 // pred_region
        _
      $region40: #{tpu_custom_call.1} parent=27 // pred_fallthru
        _
      // Predicated region
      $region41: #{tpu_custom_call.1} parent=27 // pred_check
        %p491 = pneg %p127
      $region42: #{tpu_custom_call.1} parent=27 // pred_check_branch
        %493 = sbr.rel (%p491) target = $region44
      $region43: #{tpu_custom_call.1} parent=27 // pred_region
        _
      $region44: #{tpu_custom_call.1} parent=27 // pred_fallthru
        _
    $region28: #{tpu_custom_call.1} parent=5 // pred_fallthru
      _
    %p494 = scmp.le.s32.totalorder 2, %s10
    // Predicated region
    $region45: #{tpu_custom_call.1} parent=5 // pred_check
      %p495 = pneg %p494
    $region46: #{tpu_custom_call.1} parent=5 // pred_check_branch
      %497 = sbr.rel (%p495) target = $region48
    $region47: #{tpu_custom_call.1} parent=5 // pred_region
      %s498 = ssub.s32 %s10, 2
      // Predicated region
      $region49: #{tpu_custom_call.1} parent=47 // pred_check
        %p499 = pneg %p107
      $region50: #{tpu_custom_call.1} parent=47 // pred_check_branch
        %501 = sbr.rel (%p499) target = $region52
      $region51: #{tpu_custom_call.1} parent=47 // pred_region
        %p502 = scmp.lt.s32.totalorder %s21, 1
        %s503 = scalar_select %p502, %s21, 1
        %s504 = scalar_lea.vmem %s2, %s503
      $region52: #{tpu_custom_call.1} parent=47 // pred_fallthru
        _
      // Predicated region
      $region53: #{tpu_custom_call.1} parent=47 // pred_check
        %p505 = pneg %p133
      $region54: #{tpu_custom_call.1} parent=47 // pred_check_branch
        %507 = sbr.rel (%p505) target = $region56
      $region55: #{tpu_custom_call.1} parent=47 // pred_region
        %p508 = scmp.lt.s32.totalorder %s21, 1
        %s509 = scalar_select %p508, %s21, 1
        %s510 = scalar_lea.vmem %s3, %s509
      $region56: #{tpu_custom_call.1} parent=47 // pred_fallthru
        _
    $region48: #{tpu_custom_call.1} parent=5 // pred_fallthru
      _
  $region6: #{tpu_custom_call.1} parent=0 // loop_footer
    %s14 = sadd.s32 1, %s10
  $region7: #{tpu_custom_call.1} parent=0 // loop_footer_branch
    %9 = sbr.rel target = $region3
  $region8: #{tpu_custom_call.1} parent=0 // loop_exit
    _

</llo_original>
